<compile_context>
chip_gen: v5e
topology: v5e:2x2
jax: 0.10.0
libtpu: 0.0.40
codegen_flags: <defaults>
</compile_context>

<pallas_src>
import functools

import jax
import jax.numpy as jnp
from jax import lax
from jax.experimental import pallas as pl
from jax.experimental.pallas import tpu as pltpu

B_TILE = 8    # batch tile (multiple of 8 -> sublane-dense blocks)
F_PAD = 128   # lane-dense padding for the (branch-major) filter/feature dim
C_PAD = 128   # lane-dense padding for the class dim of the output block


def _round_up(x, m):
    return ((x + m - 1) // m) * m


def _textcnn_kernel(b_tile, t_pad, k_max,
                    tok_ref, embed_ref, w_all_ref, b_all_ref, mask_ref,
                    fc_w_ref, fc_b_ref, out_ref, col_ref):
    """Fused one-hot embed gather + im2col + conv(all branches) + ReLU + pool + FC.

    Layouts (per batch tile):
      tok_ref    (b_tile*t_pad, k_max)  int32  shifted tokens, sentinel = V_PAD
      embed_ref  (V_PAD, E)             bf16   zero-padded embedding table
      w_all_ref  (k_max*E, F_PAD)       bf16   fused conv weights (zero-padded taps)
      b_all_ref  (1, F_PAD)             f32    fused conv bias
      mask_ref   (t_pad, F_PAD)         f32    per-branch valid-time 0/1 mask
      fc_w_ref   (F_PAD, C_PAD)         bf16
      fc_b_ref   (1, C_PAD)             f32
      out_ref    (b_tile, C_PAD)        f32
      col_ref    (b_tile*t_pad, k_max*E) bf16  im2col scratch (fully overwritten)
    """
    v_pad, e = embed_ref.shape
    m = b_tile * t_pad

    embed = embed_ref[...]                                       # (V_PAD, E) bf16
    tok = tok_ref[...]                                           # (m, k_max) int32
    vocab_ids = lax.broadcasted_iota(jnp.int32, (m, v_pad), 1)

    # --- fused embedding gather + im2col assembly ------------------------
    # One MXU one-hot matmul per tap; the gathered rows are written straight
    # into the im2col scratch at their static lane offset j*E (no per-token
    # loop, no concatenates, no sublane-misaligned tap slices).  Sentinel
    # tokens (== V_PAD) match nothing -> zero rows -> no scratch zeroing.
    for j in range(k_max):                                       # k_max is tiny & static
        onehot_j = jnp.where(vocab_ids == tok[:, j:j + 1], 1.0, 0.0)
        emb_j = jnp.dot(onehot_j.astype(jnp.bfloat16), embed,
                        preferred_element_type=jnp.float32)      # (m, E)
        col_ref[:, j * e:(j + 1) * e] = emb_j.astype(jnp.bfloat16)

    # --- all conv branches in ONE lane-dense 128-wide MXU matmul ---------
    h = jnp.dot(col_ref[...], w_all_ref[...],
                preferred_element_type=jnp.float32)              # (m, F_PAD) f32
    h = jnp.maximum(h + b_all_ref[...], 0.0)                     # bias + ReLU

    # --- per-branch valid-time mask + a single max-pool over time --------
    # 0 is an exact identity for the masked max: ReLU makes h >= 0 and every
    # branch has >= 1 valid time step; padded filter lanes only ever multiply
    # the zero rows of fc_w.  (Use -inf if the activation could go negative.)
    h3 = h.reshape(b_tile, t_pad, h.shape[-1])                   # free split (t_pad % 8 == 0)
    mask3 = mask_ref[...].reshape(1, t_pad, h.shape[-1]) > 0.0
    pooled = jnp.max(jnp.where(mask3, h3, 0.0), axis=1)          # (b_tile, F_PAD) f32

    # --- FC (lane-dense padded) + Bias ------------------------------------
    logits = jnp.dot(pooled.astype(jnp.bfloat16), fc_w_ref[...],
                     preferred_element_type=jnp.float32)         # (b_tile, C_PAD)
    out_ref[...] = logits + fc_b_ref[...]


def pack_textcnn_params(params, kernel_sizes, sequence_length):
    """One-time packing of torch-layout params into fused, lane-dense slabs."""
    embed = params['embed']        # (V, E)  f32
    conv_w = params['conv_w']      # list of (k, E, F)   (= torch (F,1,k,E) transposed)
    conv_b = params['conv_b']      # list of (1, F)
    fc_w = params['fc_w']          # (F_total, C)        (= torch (C, F_total).T)
    fc_b = params['fc_b']          # (1, C)

    V, E = embed.shape
    F = conv_w[0].shape[-1]
    C = fc_w.shape[-1]
    L = sequence_length
    k_max, k_min = max(kernel_sizes), min(kernel_sizes)
    T_max = L - k_min + 1
    T_PAD = _round_up(T_max, 8)          # sublane-aligned time window
    V_PAD = _round_up(V, 128)            # lane-dense one-hot / contraction dim
    F_total = F * len(kernel_sizes)
    assert F_total <= F_PAD and C <= C_PAD

    w_all = jnp.zeros((k_max * E, F_PAD), jnp.float32)
    b_all = jnp.zeros((1, F_PAD), jnp.float32)
    mask = jnp.zeros((T_PAD, F_PAD), jnp.float32)
    for i, (k, w, b) in enumerate(zip(kernel_sizes, conv_w, conv_b)):
        # taps j >= k stay zero -> padded taps contribute exactly nothing.
        w_all = w_all.at[:k * E, i * F:(i + 1) * F].set(w.reshape(k * E, F))
        b_all = b_all.at[:, i * F:(i + 1) * F].set(b)
        mask = mask.at[:L - k + 1, i * F:(i + 1) * F].set(1.0)

    embed_pad = jnp.zeros((V_PAD, E), jnp.float32).at[:V].set(embed)
    fc_w_pad = jnp.zeros((F_PAD, C_PAD), jnp.float32).at[:F_total, :C].set(fc_w)
    fc_b_pad = jnp.zeros((1, C_PAD), jnp.float32).at[:, :C].set(fc_b)

    return dict(embed=embed_pad.astype(jnp.bfloat16),      # bf16 MXU operand
                w_all=w_all.astype(jnp.bfloat16),           # bf16 MXU operand
                b_all=b_all, mask=mask,
                fc_w=fc_w_pad.astype(jnp.bfloat16),          # bf16 MXU operand
                fc_b=fc_b_pad,
                num_classes=C, T_PAD=T_PAD, V_PAD=V_PAD)


def textcnn_forward(tokens, packed, kernel_sizes):
    """tokens: (B, L) int32.  Returns logits (B, num_classes) float32."""
    B, L = tokens.shape
    V_PAD, E = packed['embed'].shape
    C = packed['num_classes']
    T_PAD = packed['mask'].shape[0]
    k_max = max(kernel_sizes)

    # Pad the batch to a whole number of sublane-dense tiles.
    B_pad = _round_up(B, B_TILE)
    M_TILE = B_TILE * T_PAD

    # Shifted-token table: tok_taps[b*T_PAD + t, j] = tokens[b, t + j]; out of
    # range / batch padding -> sentinel V_PAD (all-zero one-hot -> zero embed).
    SENT = jnp.int32(V_PAD)
    Lx = T_PAD + k_max - 1
    tokens_pad = jnp.full((B_pad, Lx), SENT, jnp.int32).at[:B, :L].set(
        tokens.astype(jnp.int32))
    tok_taps = jnp.stack([tokens_pad[:, j:j + T_PAD] for j in range(k_max)],
                         axis=-1).reshape(B_pad * T_PAD, k_max)

    kernel = functools.partial(_textcnn_kernel, B_TILE, T_PAD, k_max)

    out_pad = pl.pallas_call(
        kernel,
        out_shape=jax.ShapeDtypeStruct((B_pad, C_PAD), jnp.float32),
        grid_spec=pltpu.PrefetchScalarGridSpec(
            num_scalar_prefetch=0,
            grid=(B_pad // B_TILE,),
            in_specs=[
                pl.BlockSpec((M_TILE, k_max), lambda i: (i, 0)),     # tokens (per tile)
                pl.BlockSpec((V_PAD, E), lambda i: (0, 0)),          # embed table
                pl.BlockSpec((k_max * E, F_PAD), lambda i: (0, 0)),  # fused conv w
                pl.BlockSpec((1, F_PAD), lambda i: (0, 0)),          # fused conv b
                pl.BlockSpec((T_PAD, F_PAD), lambda i: (0, 0)),      # valid-time mask
                pl.BlockSpec((F_PAD, C_PAD), lambda i: (0, 0)),      # fc weight
                pl.BlockSpec((1, C_PAD), lambda i: (0, 0)),          # fc bias
            ],
            out_specs=pl.BlockSpec((B_TILE, C_PAD), lambda i: (i, 0)),
            scratch_shapes=[pltpu.VMEM((M_TILE, k_max * E), jnp.bfloat16)],
        ),
        compiler_params=pltpu.CompilerParams(
            dimension_semantics=("parallel",),     # v7x: one batch tile per TensorCore
            vmem_limit_bytes=32 * 1024 * 1024,
        ),
    )(tok_taps, packed['embed'], packed['w_all'], packed['b_all'],
      packed['mask'], packed['fc_w'], packed['fc_b'])

    return out_pad[:B, :C]        # strip batch tiling + class lane padding


if __name__ == "__main__":
    # Module hyper-parameters (small, consistent with the forward pass).
    num_filters = 4
    kernel_sizes = (2, 3, 4)          # 3 sizes => torch cat dim 3 == last dim
    vocab_size = 50
    embedding_size = 32               # k_max * E = 4 * 32 = 128 contraction width
    num_classes = 3
    sequence_length = 8
    batch = 8                         # exactly one sublane-dense batch tile

    key = jax.random.PRNGKey(0)
    keys = jax.random.split(key, 10)

    embed = jax.random.normal(keys[0], (vocab_size, embedding_size), jnp.float32)
    conv_w, conv_b = [], []
    for i, k in enumerate(kernel_sizes):
        # torch Conv2d weight (F, 1, k, E) -> kernel layout (k, E, F)
        conv_w.append(0.1 * jax.random.normal(
            keys[1 + i], (k, embedding_size, num_filters), jnp.float32))
        conv_b.append(0.1 * jax.random.normal(
            keys[4 + i], (1, num_filters), jnp.float32))
    num_filter_total = num_filters * len(kernel_sizes)
    # torch Linear weight (C, F_total) -> (F_total, C)
    fc_w = 0.1 * jax.random.normal(
        keys[7], (num_filter_total, num_classes), jnp.float32)
    fc_b = jnp.ones((1, num_classes), jnp.float32)   # self.Bias = torch.ones([C])

    tokens = jax.random.randint(
        keys[8], (batch, sequence_length), 0, vocab_size, dtype=jnp.int32)

    params = dict(embed=embed, conv_w=conv_w, conv_b=conv_b,
                  fc_w=fc_w, fc_b=fc_b)
    packed = pack_textcnn_params(params, kernel_sizes, sequence_length)

    out = jax.block_until_ready(textcnn_forward(tokens, packed, kernel_sizes))

    # Pure-JAX f32 reference (torch-equivalent) for a sanity check.
    emb = embed[tokens]
    pooled = []
    for w, b, k in zip(conv_w, conv_b, kernel_sizes):
        T = sequence_length - k + 1
        acc = jnp.zeros((batch, T, num_filters), jnp.float32)
        for j in range(k):
            acc = acc + jnp.einsum('bte,ef->btf', emb[:, j:j + T, :], w[j])
        pooled.append(jnp.max(jnp.maximum(acc + b, 0.0), axis=1))
    ref = jnp.concatenate(pooled, axis=-1) @ fc_w + fc_b

    assert out.shape == (batch, num_classes)
    # bf16 matmul operands (f32 accumulation) -> bf16-level tolerance vs f32 ref.
    assert jnp.allclose(out, ref, atol=3e-2, rtol=3e-2), (out, ref)
    print("KERNEL_OK")
</pallas_src>

<mosaic_0001>
module attributes {stable_mosaic.version = 11 : i64} {
  func.func @_textcnn_kernel(%arg0: i32, %arg1: memref<64x4xi32, #tpu.memory_space<vmem>>, %arg2: memref<128x32xbf16, #tpu.memory_space<vmem>>, %arg3: memref<128x128xbf16, #tpu.memory_space<vmem>>, %arg4: memref<1x128xf32, #tpu.memory_space<vmem>>, %arg5: memref<8x128xf32, #tpu.memory_space<vmem>>, %arg6: memref<128x128xbf16, #tpu.memory_space<vmem>>, %arg7: memref<1x128xf32, #tpu.memory_space<vmem>>, %arg8: memref<8x128xf32, #tpu.memory_space<vmem>>, %arg9: memref<64x128xbf16, #tpu.memory_space<vmem>>) attributes {dimension_semantics = [#tpu.dimension_semantics<parallel>], iteration_bounds = array<i64: 1>, scalar_prefetch = 0 : i64, scratch_operands = 1 : i64, tpu.core_type = #tpu.core_type<tc>, window_params = [{transform_indices = @transform_0, window_bounds = array<i64: 64, 4>}, {pipeline_mode = #tpu.pipeline_mode<synchronous>, transform_indices = @transform_1, window_bounds = array<i64: 128, 32>}, {pipeline_mode = #tpu.pipeline_mode<synchronous>, transform_indices = @transform_2, window_bounds = array<i64: 128, 128>}, {pipeline_mode = #tpu.pipeline_mode<synchronous>, transform_indices = @transform_3, window_bounds = array<i64: 1, 128>}, {pipeline_mode = #tpu.pipeline_mode<synchronous>, transform_indices = @transform_4, window_bounds = array<i64: 8, 128>}, {pipeline_mode = #tpu.pipeline_mode<synchronous>, transform_indices = @transform_5, window_bounds = array<i64: 128, 128>}, {pipeline_mode = #tpu.pipeline_mode<synchronous>, transform_indices = @transform_6, window_bounds = array<i64: 1, 128>}, {transform_indices = @transform_7, window_bounds = array<i64: 8, 128>}]} {
    %c0 = arith.constant 0 : index
    %c0_0 = arith.constant 0 : index
    %0 = vector.load %arg2[%c0, %c0_0] : memref<128x32xbf16, #tpu.memory_space<vmem>>, vector<128x32xbf16>
    %c0_1 = arith.constant 0 : index
    %c0_2 = arith.constant 0 : index
    %1 = vector.load %arg1[%c0_1, %c0_2] : memref<64x4xi32, #tpu.memory_space<vmem>>, vector<64x4xi32>
    %2 = tpu.iota {dimensions = array<i32: 1>} : vector<64x128xi32>
    %3 = vector.extract_strided_slice %1 {offsets = [0, 0], sizes = [64, 1], strides = [1, 1]} : vector<64x4xi32> to vector<64x1xi32>
    %4 = vector.broadcast %3 : vector<64x1xi32> to vector<64x128xi32>
    %5 = arith.cmpi eq, %2, %4 : vector<64x128xi32>
    %cst = arith.constant 1.000000e+00 : f32
    %cst_3 = arith.constant 0.000000e+00 : f32
    %6 = vector.broadcast %cst : f32 to vector<64x128xf32>
    %7 = vector.broadcast %cst_3 : f32 to vector<64x128xf32>
    %8 = arith.select %5, %6, %7 : vector<64x128xi1>, vector<64x128xf32>
    %9 = arith.truncf %8 : vector<64x128xf32> to vector<64x128xbf16>
    %cst_4 = arith.constant dense<0.000000e+00> : vector<64x32xf32>
    %10 = tpu.matmul %9, %0, %cst_4 {dimension_numbers = #tpu.dot_dimension_numbers<[1], [0], [0], [1], [0, 0, 1, 1], [], []>} : vector<64x128xbf16>, vector<128x32xbf16>, vector<64x32xf32> -> vector<64x32xf32>
    %11 = arith.truncf %10 : vector<64x32xf32> to vector<64x32xbf16>
    %c0_5 = arith.constant 0 : index
    %c0_6 = arith.constant 0 : index
    %12 = vector.load %arg9[%c0_5, %c0_6] : memref<64x128xbf16, #tpu.memory_space<vmem>>, vector<64x32xbf16>
    tpu.vector_store %arg9[%c0_5, %c0_6], %11 {strides = array<i32>} : memref<64x128xbf16, #tpu.memory_space<vmem>>, vector<64x32xbf16>,
    %13 = vector.extract_strided_slice %1 {offsets = [0, 1], sizes = [64, 1], strides = [1, 1]} : vector<64x4xi32> to vector<64x1xi32>
    %14 = vector.broadcast %13 : vector<64x1xi32> to vector<64x128xi32>
    %15 = arith.cmpi eq, %2, %14 : vector<64x128xi32>
    %cst_7 = arith.constant 1.000000e+00 : f32
    %cst_8 = arith.constant 0.000000e+00 : f32
    %16 = vector.broadcast %cst_7 : f32 to vector<64x128xf32>
    %17 = vector.broadcast %cst_8 : f32 to vector<64x128xf32>
    %18 = arith.select %15, %16, %17 : vector<64x128xi1>, vector<64x128xf32>
    %19 = arith.truncf %18 : vector<64x128xf32> to vector<64x128xbf16>
    %cst_9 = arith.constant dense<0.000000e+00> : vector<64x32xf32>
    %20 = tpu.matmul %19, %0, %cst_9 {dimension_numbers = #tpu.dot_dimension_numbers<[1], [0], [0], [1], [0, 0, 1, 1], [], []>} : vector<64x128xbf16>, vector<128x32xbf16>, vector<64x32xf32> -> vector<64x32xf32>
    %21 = arith.truncf %20 : vector<64x32xf32> to vector<64x32xbf16>
    %c0_10 = arith.constant 0 : index
    %c32 = arith.constant 32 : index
    %22 = vector.load %arg9[%c0_10, %c32] : memref<64x128xbf16, #tpu.memory_space<vmem>>, vector<64x32xbf16>
    tpu.vector_store %arg9[%c0_10, %c32], %21 {strides = array<i32>} : memref<64x128xbf16, #tpu.memory_space<vmem>>, vector<64x32xbf16>,
    %23 = vector.extract_strided_slice %1 {offsets = [0, 2], sizes = [64, 1], strides = [1, 1]} : vector<64x4xi32> to vector<64x1xi32>
    %24 = vector.broadcast %23 : vector<64x1xi32> to vector<64x128xi32>
    %25 = arith.cmpi eq, %2, %24 : vector<64x128xi32>
    %cst_11 = arith.constant 1.000000e+00 : f32
    %cst_12 = arith.constant 0.000000e+00 : f32
    %26 = vector.broadcast %cst_11 : f32 to vector<64x128xf32>
    %27 = vector.broadcast %cst_12 : f32 to vector<64x128xf32>
    %28 = arith.select %25, %26, %27 : vector<64x128xi1>, vector<64x128xf32>
    %29 = arith.truncf %28 : vector<64x128xf32> to vector<64x128xbf16>
    %cst_13 = arith.constant dense<0.000000e+00> : vector<64x32xf32>
    %30 = tpu.matmul %29, %0, %cst_13 {dimension_numbers = #tpu.dot_dimension_numbers<[1], [0], [0], [1], [0, 0, 1, 1], [], []>} : vector<64x128xbf16>, vector<128x32xbf16>, vector<64x32xf32> -> vector<64x32xf32>
    %31 = arith.truncf %30 : vector<64x32xf32> to vector<64x32xbf16>
    %c0_14 = arith.constant 0 : index
    %c64 = arith.constant 64 : index
    %32 = vector.load %arg9[%c0_14, %c64] : memref<64x128xbf16, #tpu.memory_space<vmem>>, vector<64x32xbf16>
    tpu.vector_store %arg9[%c0_14, %c64], %31 {strides = array<i32>} : memref<64x128xbf16, #tpu.memory_space<vmem>>, vector<64x32xbf16>,
    %33 = vector.extract_strided_slice %1 {offsets = [0, 3], sizes = [64, 1], strides = [1, 1]} : vector<64x4xi32> to vector<64x1xi32>
    %34 = vector.broadcast %33 : vector<64x1xi32> to vector<64x128xi32>
    %35 = arith.cmpi eq, %2, %34 : vector<64x128xi32>
    %cst_15 = arith.constant 1.000000e+00 : f32
    %cst_16 = arith.constant 0.000000e+00 : f32
    %36 = vector.broadcast %cst_15 : f32 to vector<64x128xf32>
    %37 = vector.broadcast %cst_16 : f32 to vector<64x128xf32>
    %38 = arith.select %35, %36, %37 : vector<64x128xi1>, vector<64x128xf32>
    %39 = arith.truncf %38 : vector<64x128xf32> to vector<64x128xbf16>
    %cst_17 = arith.constant dense<0.000000e+00> : vector<64x32xf32>
    %40 = tpu.matmul %39, %0, %cst_17 {dimension_numbers = #tpu.dot_dimension_numbers<[1], [0], [0], [1], [0, 0, 1, 1], [], []>} : vector<64x128xbf16>, vector<128x32xbf16>, vector<64x32xf32> -> vector<64x32xf32>
    %41 = arith.truncf %40 : vector<64x32xf32> to vector<64x32xbf16>
    %c0_18 = arith.constant 0 : index
    %c96 = arith.constant 96 : index
    %42 = vector.load %arg9[%c0_18, %c96] : memref<64x128xbf16, #tpu.memory_space<vmem>>, vector<64x32xbf16>
    tpu.vector_store %arg9[%c0_18, %c96], %41 {strides = array<i32>} : memref<64x128xbf16, #tpu.memory_space<vmem>>, vector<64x32xbf16>,
    %c0_19 = arith.constant 0 : index
    %c0_20 = arith.constant 0 : index
    %43 = vector.load %arg9[%c0_19, %c0_20] : memref<64x128xbf16, #tpu.memory_space<vmem>>, vector<64x128xbf16>
    %c0_21 = arith.constant 0 : index
    %c0_22 = arith.constant 0 : index
    %44 = vector.load %arg3[%c0_21, %c0_22] : memref<128x128xbf16, #tpu.memory_space<vmem>>, vector<128x128xbf16>
    %cst_23 = arith.constant dense<0.000000e+00> : vector<64x128xf32>
    %45 = tpu.matmul %43, %44, %cst_23 {dimension_numbers = #tpu.dot_dimension_numbers<[1], [0], [0], [1], [0, 0, 1, 1], [], []>} : vector<64x128xbf16>, vector<128x128xbf16>, vector<64x128xf32> -> vector<64x128xf32>
    %c0_24 = arith.constant 0 : index
    %c0_25 = arith.constant 0 : index
    %46 = vector.load %arg4[%c0_24, %c0_25] : memref<1x128xf32, #tpu.memory_space<vmem>>, vector<1x128xf32>
    %47 = vector.broadcast %46 : vector<1x128xf32> to vector<64x128xf32>
    %48 = arith.addf %45, %47 : vector<64x128xf32>
    %cst_26 = arith.constant 0.000000e+00 : f32
    %49 = vector.broadcast %cst_26 : f32 to vector<64x128xf32>
    %50 = arith.maximumf %48, %49 : vector<64x128xf32>
    %51 = vector.shape_cast %50 : vector<64x128xf32> to vector<8x8x128xf32>
    %c0_27 = arith.constant 0 : index
    %c0_28 = arith.constant 0 : index
    %52 = vector.load %arg5[%c0_27, %c0_28] : memref<8x128xf32, #tpu.memory_space<vmem>>, vector<8x128xf32>
    %53 = vector.shape_cast %52 : vector<8x128xf32> to vector<1x8x128xf32>
    %cst_29 = arith.constant 0.000000e+00 : f32
    %54 = vector.broadcast %cst_29 : f32 to vector<1x8x128xf32>
    %55 = arith.cmpf ogt, %53, %54 : vector<1x8x128xf32>
    %cst_30 = arith.constant 0.000000e+00 : f32
    %56 = vector.shape_cast %55 : vector<1x8x128xi1> to vector<1x8x128xi1>
    %57 = vector.broadcast %56 : vector<1x8x128xi1> to vector<8x8x128xi1>
    %58 = vector.broadcast %cst_30 : f32 to vector<8x8x128xf32>
    %59 = arith.select %57, %51, %58 : vector<8x8x128xi1>, vector<8x8x128xf32>
    %cst_31 = arith.constant dense<0xFF800000> : vector<8x128xf32>
    %60 = vector.multi_reduction <maximumf>, %59, %cst_31 [1] : vector<8x8x128xf32> to vector<8x128xf32>
    %61 = arith.truncf %60 : vector<8x128xf32> to vector<8x128xbf16>
    %c0_32 = arith.constant 0 : index
    %c0_33 = arith.constant 0 : index
    %62 = vector.load %arg6[%c0_32, %c0_33] : memref<128x128xbf16, #tpu.memory_space<vmem>>, vector<128x128xbf16>
    %cst_34 = arith.constant dense<0.000000e+00> : vector<8x128xf32>
    %63 = tpu.matmul %61, %62, %cst_34 {dimension_numbers = #tpu.dot_dimension_numbers<[1], [0], [0], [1], [0, 0, 1, 1], [], []>} : vector<8x128xbf16>, vector<128x128xbf16>, vector<8x128xf32> -> vector<8x128xf32>
    %c0_35 = arith.constant 0 : index
    %c0_36 = arith.constant 0 : index
    %64 = vector.load %arg7[%c0_35, %c0_36] : memref<1x128xf32, #tpu.memory_space<vmem>>, vector<1x128xf32>
    %65 = vector.broadcast %64 : vector<1x128xf32> to vector<8x128xf32>
    %66 = arith.addf %63, %65 : vector<8x128xf32>
    %c0_37 = arith.constant 0 : index
    %c0_38 = arith.constant 0 : index
    %67 = vector.load %arg8[%c0_37, %c0_38] : memref<8x128xf32, #tpu.memory_space<vmem>>, vector<8x128xf32>
    tpu.vector_store %arg8[%c0_37, %c0_38], %66 {strides = array<i32>} : memref<8x128xf32, #tpu.memory_space<vmem>>, vector<8x128xf32>,
    return
  }
  func.func @transform_0(%arg0: i32) -> (i32, i32) {
    %c0_i32 = arith.constant 0 : i32
    %c0_i32_0 = arith.constant 0 : i32
    return %arg0, %c0_i32 : i32, i32
  }
  func.func @transform_1(%arg0: i32) -> (i32, i32) {
    %c0_i32 = arith.constant 0 : i32
    %c0_i32_0 = arith.constant 0 : i32
    %c0_i32_1 = arith.constant 0 : i32
    return %c0_i32, %c0_i32_0 : i32, i32
  }
  func.func @transform_2(%arg0: i32) -> (i32, i32) {
    %c0_i32 = arith.constant 0 : i32
    %c0_i32_0 = arith.constant 0 : i32
    %c0_i32_1 = arith.constant 0 : i32
    return %c0_i32, %c0_i32_0 : i32, i32
  }
  func.func @transform_3(%arg0: i32) -> (i32, i32) {
    %c0_i32 = arith.constant 0 : i32
    %c0_i32_0 = arith.constant 0 : i32
    %c0_i32_1 = arith.constant 0 : i32
    return %c0_i32, %c0_i32_0 : i32, i32
  }
  func.func @transform_4(%arg0: i32) -> (i32, i32) {
    %c0_i32 = arith.constant 0 : i32
    %c0_i32_0 = arith.constant 0 : i32
    %c0_i32_1 = arith.constant 0 : i32
    return %c0_i32, %c0_i32_0 : i32, i32
  }
  func.func @transform_5(%arg0: i32) -> (i32, i32) {
    %c0_i32 = arith.constant 0 : i32
    %c0_i32_0 = arith.constant 0 : i32
    %c0_i32_1 = arith.constant 0 : i32
    return %c0_i32, %c0_i32_0 : i32, i32
  }
  func.func @transform_6(%arg0: i32) -> (i32, i32) {
    %c0_i32 = arith.constant 0 : i32
    %c0_i32_0 = arith.constant 0 : i32
    %c0_i32_1 = arith.constant 0 : i32
    return %c0_i32, %c0_i32_0 : i32, i32
  }
  func.func @transform_7(%arg0: i32) -> (i32, i32) {
    %c0_i32 = arith.constant 0 : i32
    %c0_i32_0 = arith.constant 0 : i32
    return %arg0, %c0_i32 : i32, i32
  }
}

</mosaic_0001>

<llo_original>
// kernel: tpu_custom_call.1
$region0: #{tpu_custom_call.1}
  #allocation0 [shape = 'u32[]', space=smem, size = 0x4, offset = 0x4, fixed_abs, tag = 'smem constant byte address 0x4 - core index']
  #allocation1 [shape = 'u32[72,128]{1,0:T(1,128)}', space=vmem, size = 0x9000, scoped, tag = 'internal scratch']
  #allocation2 [shape = 'bf16[64,128]{1,0:T(8,128)(2,1)}', space=vmem, size = 0x4000, scoped, tag = 'scratch operand']
  %s0 = inlined_call_operand.vmem [shape: s32[64,4], index: 0, kind: input, shape index: {}]
  %s1 = inlined_call_operand.vmem [shape: bf16[128,32], index: 1, kind: input, shape index: {}]
  %s2 = inlined_call_operand.vmem [shape: bf16[128,128], index: 2, kind: input, shape index: {}]
  %s3 = inlined_call_operand.vmem [shape: f32[1,128], index: 3, kind: input, shape index: {}]
  %s4 = inlined_call_operand.hbm [shape: f32[8,128], index: 4, kind: input, shape index: {}]
  %s5 = inlined_call_operand.vmem [shape: bf16[128,128], index: 5, kind: input, shape index: {}]
  %s6 = inlined_call_operand.vmem [shape: f32[1,128], index: 6, kind: input, shape index: {}]
  %s7 = inlined_call_operand.hbm [shape: f32[8,128], index: 7, kind: output, shape index: {}]
  %s8 = sld [smem:[#allocation0]]
  $region42: #{tpu_custom_call.1} parent=0
    _
  %s10 = ssub.s32 1, %s8
  %s11 = scalar_select 0, %s10, %s8
  $region1: #{tpu_custom_call.1} parent=0
    #allocation3 [shape = 'u8[4096]{0}', space=vmem, size = 0x1000, scoped, tag = 'input window, operand 4, single buffered']
    #allocation4 [shape = 's32[1]{0}', space=sflag, size = 0x4, scoped, tag = 'scoped memory for tpu_custom_call.1']
    #allocation5 [shape = 's32[1]{0}', space=sflag, size = 0x4, scoped, tag = 'scoped memory for tpu_custom_call.1']
    #allocation6 [shape = 'u8[4096]{0}', space=vmem, size = 0x1000, scoped, tag = 'output window, operand 0, single buffered']
    %12 = vsyncpa [#allocation4], 0
    %13 = vsyncpa [#allocation5], 0
    // Predicated region
    $region2: #{tpu_custom_call.1} parent=1 // pred_check
      _
    $region3: #{tpu_custom_call.1} parent=1 // pred_check_branch
      %15 = sbr.rel (0) target = $region5
    $region4: #{tpu_custom_call.1} parent=1 // pred_region
      _
    $region5: #{tpu_custom_call.1} parent=1 // pred_fallthru
      _
    // Predicated region
    $region6: #{tpu_custom_call.1} parent=1 // pred_check
      _
    $region7: #{tpu_custom_call.1} parent=1 // pred_check_branch
      %17 = sbr.rel (0) target = $region9
    $region8: #{tpu_custom_call.1} parent=1 // pred_region
      _
    $region9: #{tpu_custom_call.1} parent=1 // pred_fallthru
      _
    // Predicated region
    $region10: #{tpu_custom_call.1} parent=1 // pred_check
      _
    $region11: #{tpu_custom_call.1} parent=1 // pred_check_branch
      %19 = sbr.rel (0) target = $region13
    $region12: #{tpu_custom_call.1} parent=1 // pred_region
      _
    $region13: #{tpu_custom_call.1} parent=1 // pred_fallthru
      _
    // Predicated region
    $region14: #{tpu_custom_call.1} parent=1 // pred_check
      _
    $region15: #{tpu_custom_call.1} parent=1 // pred_check_branch
      %21 = sbr.rel (0) target = $region17
    $region16: #{tpu_custom_call.1} parent=1 // pred_region
      _
    $region17: #{tpu_custom_call.1} parent=1 // pred_fallthru
      _
    // Predicated region
    $region18: #{tpu_custom_call.1} parent=1 // pred_check
      _
    $region19: #{tpu_custom_call.1} parent=1 // pred_check_branch
      %23 = sbr.rel (0) target = $region21
    $region20: #{tpu_custom_call.1} parent=1 // pred_region
      %25 = vsyncadd [#allocation4], 0
      %s27 = sshll.u32 %s4, 4
      %s28 = int_to_ptr.hbm [resolvable:$true] %s27
      %s29 = sshll.u32 [#allocation3], 4
      %s30 = int_to_ptr.vmem [resolvable:$true] %s29
      %32 = dma.hbm_to_vmem [thread:$0]  %s28, 128, %s30, [#allocation4]
    $region21: #{tpu_custom_call.1} parent=1 // pred_fallthru
      _
    // Predicated region
    $region22: #{tpu_custom_call.1} parent=1 // pred_check
      _
    $region23: #{tpu_custom_call.1} parent=1 // pred_check_branch
      %34 = sbr.rel (0) target = $region25
    $region24: #{tpu_custom_call.1} parent=1 // pred_region
      _
    $region25: #{tpu_custom_call.1} parent=1 // pred_fallthru
      _
    // Predicated region
    $region26: #{tpu_custom_call.1} parent=1 // pred_check
      _
    $region27: #{tpu_custom_call.1} parent=1 // pred_check_branch
      %36 = sbr.rel (0) target = $region29
    $region28: #{tpu_custom_call.1} parent=1 // pred_region
      _
    $region29: #{tpu_custom_call.1} parent=1 // pred_fallthru
      _
    // Predicated region
    $region30: #{tpu_custom_call.1} parent=1 // pred_check
      _
    $region31: #{tpu_custom_call.1} parent=1 // pred_check_branch
      %38 = sbr.rel (0) target = $region33
    $region32: #{tpu_custom_call.1} parent=1 // pred_region
      %40 = dma.done [#allocation4], 128
    $region33: #{tpu_custom_call.1} parent=1 // pred_fallthru
      _
    %v41 = vld [vmem:[%s1] sm:$0xf]
    %v42 = vld [vmem:[%s1 + $0x4] sm:$0xf]
    %v43 = vld [vmem:[%s1 + $0x8] sm:$0xf]
    %v44 = vld [vmem:[%s1 + $0xc] sm:$0xf]
    %v45 = vld [vmem:[%s1 + $0x10] sm:$0xf]
    %v46 = vld [vmem:[%s1 + $0x14] sm:$0xf]
    %v47 = vld [vmem:[%s1 + $0x18] sm:$0xf]
    %v48 = vld [vmem:[%s1 + $0x1c] sm:$0xf]
    %v49 = vld [vmem:[%s1 + $0x20] sm:$0xf]
    %v50 = vld [vmem:[%s1 + $0x24] sm:$0xf]
    %v51 = vld [vmem:[%s1 + $0x28] sm:$0xf]
    %v52 = vld [vmem:[%s1 + $0x2c] sm:$0xf]
    %v53 = vld [vmem:[%s1 + $0x30] sm:$0xf]
    %v54 = vld [vmem:[%s1 + $0x34] sm:$0xf]
    %v55 = vld [vmem:[%s1 + $0x38] sm:$0xf]
    %v56 = vld [vmem:[%s1 + $0x3c] sm:$0xf]
    %v57 = vld [vmem:[%s0] sm:$0xff]
    %v58 = vld [vmem:[%s0 + $0x8] sm:$0xff]
    %v59 = vld [vmem:[%s0 + $0x10] sm:$0xff]
    %v60 = vld [vmem:[%s0 + $0x18] sm:$0xff]
    %v61 = vld [vmem:[%s0 + $0x20] sm:$0xff]
    %v62 = vld [vmem:[%s0 + $0x28] sm:$0xff]
    %v63 = vld [vmem:[%s0 + $0x30] sm:$0xff]
    %v64 = vld [vmem:[%s0 + $0x38] sm:$0xff]
    %v65 = vlaneseq
    %v66 = vand.u32 %v65, 127
    %67 = vset.pattern.permute.xlu0 0
    %68 = vperm.xlu0 %67, %v57
    %v69 = vpop.permute.xlu0 %68
    %70 = vset.pattern.permute.xlu0 0
    %71 = vperm.xlu0 %70, %v58
    %v72 = vpop.permute.xlu0 %71
    %73 = vset.pattern.permute.xlu0 0
    %74 = vperm.xlu0 %73, %v59
    %v75 = vpop.permute.xlu0 %74
    %76 = vset.pattern.permute.xlu0 0
    %77 = vperm.xlu0 %76, %v60
    %v78 = vpop.permute.xlu0 %77
    %79 = vset.pattern.permute.xlu0 0
    %80 = vperm.xlu0 %79, %v61
    %v81 = vpop.permute.xlu0 %80
    %82 = vset.pattern.permute.xlu0 0
    %83 = vperm.xlu0 %82, %v62
    %v84 = vpop.permute.xlu0 %83
    %85 = vset.pattern.permute.xlu0 0
    %86 = vperm.xlu0 %85, %v63
    %v87 = vpop.permute.xlu0 %86
    %88 = vset.pattern.permute.xlu0 0
    %89 = vperm.xlu0 %88, %v64
    %v90 = vpop.permute.xlu0 %89
    %vm91 = vcmp.eq.s32.totalorder %v66, %v69
    %vm92 = vcmp.eq.s32.totalorder %v66, %v72
    %vm93 = vcmp.eq.s32.totalorder %v66, %v75
    %vm94 = vcmp.eq.s32.totalorder %v66, %v78
    %vm95 = vcmp.eq.s32.totalorder %v66, %v81
    %vm96 = vcmp.eq.s32.totalorder %v66, %v84
    %vm97 = vcmp.eq.s32.totalorder %v66, %v87
    %vm98 = vcmp.eq.s32.totalorder %v66, %v90
    %v99 = vsel %vm91, 1.0, 0.0
    %v100 = vsel %vm92, 1.0, 0.0
    %v101 = vsel %vm93, 1.0, 0.0
    %v102 = vsel %vm94, 1.0, 0.0
    %v103 = vsel %vm95, 1.0, 0.0
    %v104 = vsel %vm96, 1.0, 0.0
    %v105 = vsel %vm97, 1.0, 0.0
    %v106 = vsel %vm98, 1.0, 0.0
    %v107 = vpack.c.bf16 %v100, %v99
    %v108 = vpack.c.bf16 %v102, %v101
    %v109 = vpack.c.bf16 %v104, %v103
    %v110 = vpack.c.bf16 %v106, %v105
    %v127 = vunpack.c.l.b16 %v41
    %v128 = vunpack.c.l.b16 %v42
    %v129 = vunpack.c.l.b16 %v43
    %v130 = vunpack.c.l.b16 %v44
    %v131 = vunpack.c.l.b16 %v45
    %v132 = vunpack.c.l.b16 %v46
    %v133 = vunpack.c.l.b16 %v47
    %v134 = vunpack.c.l.b16 %v48
    %v135 = vunpack.c.l.b16 %v49
    %v136 = vunpack.c.l.b16 %v50
    %v137 = vunpack.c.l.b16 %v51
    %v138 = vunpack.c.l.b16 %v52
    %v139 = vunpack.c.l.b16 %v53
    %v140 = vunpack.c.l.b16 %v54
    %v141 = vunpack.c.l.b16 %v55
    %v142 = vunpack.c.l.b16 %v56
    %v143 = vpack.c.b16 %v128, %v127
    %v144 = vpack.c.b16 %v130, %v129
    %v145 = vpack.c.b16 %v132, %v131
    %v146 = vpack.c.b16 %v134, %v133
    %v147 = vpack.c.b16 %v136, %v135
    %v148 = vpack.c.b16 %v138, %v137
    %v149 = vpack.c.b16 %v140, %v139
    %v150 = vpack.c.b16 %v142, %v141
    %159 = vmatpush.bf16.msra.mxu0 %v150
    %160 = vmatpush.bf16.msra.mxu0 %v149
    %161 = vmatpush.bf16.msra.mxu0 %v148
    %162 = vmatpush.bf16.msra.mxu0 %v147
    %163 = vmatpush.bf16.msra.mxu0 %v146
    %164 = vmatpush.bf16.msra.mxu0 %v145
    %165 = vmatpush.bf16.msra.mxu0 %v144
    %166 = vmatpush.bf16.msra.mxu0 %v143
    %167 = vmatmul.bf16.gmra.mxu0 %v107
    %v168 = vpop.f32.mrf.mxu0
    %v169 = vadd.f32 0.0, %v168
    %v170 = vpop.f32.mrf.mxu0
    %v171 = vadd.f32 0.0, %v170
    %172 = vmatmul.bf16.gmra.mxu0 %v108
    %v173 = vpop.f32.mrf.mxu0
    %v174 = vadd.f32 0.0, %v173
    %v175 = vpop.f32.mrf.mxu0
    %v176 = vadd.f32 0.0, %v175
    %177 = vmatmul.bf16.gmra.mxu0 %v109
    %v178 = vpop.f32.mrf.mxu0
    %v179 = vadd.f32 0.0, %v178
    %v180 = vpop.f32.mrf.mxu0
    %v181 = vadd.f32 0.0, %v180
    %182 = vmatmul.bf16.gmra.mxu0 %v110
    %v183 = vpop.f32.mrf.mxu0
    %v184 = vadd.f32 0.0, %v183
    %v185 = vpop.f32.mrf.mxu0
    %v186 = vadd.f32 0.0, %v185
    %187 = vdwg.mxu0
    %v188 = vpack.c.bf16 %v169, %v169
    %v189 = vpack.c.bf16 %v171, %v171
    %v190 = vpack.c.bf16 %v174, %v174
    %v191 = vpack.c.bf16 %v176, %v176
    %v192 = vpack.c.bf16 %v179, %v179
    %v193 = vpack.c.bf16 %v181, %v181
    %v194 = vpack.c.bf16 %v184, %v184
    %v195 = vpack.c.bf16 %v186, %v186
    %vm196 = vcmask 257024
    %197 = vst.msk [vmem:[#allocation2] sm:$0xf] %vm196, %v188
    %198 = vst.msk [vmem:[#allocation2 + $0x4] sm:$0xf] %vm196, %v189
    %199 = vst.msk [vmem:[#allocation2 + $0x8] sm:$0xf] %vm196, %v190
    %200 = vst.msk [vmem:[#allocation2 + $0xc] sm:$0xf] %vm196, %v191
    %201 = vst.msk [vmem:[#allocation2 + $0x10] sm:$0xf] %vm196, %v192
    %202 = vst.msk [vmem:[#allocation2 + $0x14] sm:$0xf] %vm196, %v193
    %203 = vst.msk [vmem:[#allocation2 + $0x18] sm:$0xf] %vm196, %v194
    %204 = vst.msk [vmem:[#allocation2 + $0x1c] sm:$0xf] %vm196, %v195
    %205 = vset.pattern.permute.xlu0 1
    %206 = vperm.xlu0 %205, %v57
    %v207 = vpop.permute.xlu0 %206
    %208 = vset.pattern.permute.xlu0 1
    %209 = vperm.xlu0 %208, %v58
    %v210 = vpop.permute.xlu0 %209
    %211 = vset.pattern.permute.xlu0 1
    %212 = vperm.xlu0 %211, %v59
    %v213 = vpop.permute.xlu0 %212
    %214 = vset.pattern.permute.xlu0 1
    %215 = vperm.xlu0 %214, %v60
    %v216 = vpop.permute.xlu0 %215
    %217 = vset.pattern.permute.xlu0 1
    %218 = vperm.xlu0 %217, %v61
    %v219 = vpop.permute.xlu0 %218
    %220 = vset.pattern.permute.xlu0 1
    %221 = vperm.xlu0 %220, %v62
    %v222 = vpop.permute.xlu0 %221
    %223 = vset.pattern.permute.xlu0 1
    %224 = vperm.xlu0 %223, %v63
    %v225 = vpop.permute.xlu0 %224
    %226 = vset.pattern.permute.xlu0 1
    %227 = vperm.xlu0 %226, %v64
    %v228 = vpop.permute.xlu0 %227
    %vm229 = vcmp.eq.s32.totalorder %v66, %v207
    %vm230 = vcmp.eq.s32.totalorder %v66, %v210
    %vm231 = vcmp.eq.s32.totalorder %v66, %v213
    %vm232 = vcmp.eq.s32.totalorder %v66, %v216
    %vm233 = vcmp.eq.s32.totalorder %v66, %v219
    %vm234 = vcmp.eq.s32.totalorder %v66, %v222
    %vm235 = vcmp.eq.s32.totalorder %v66, %v225
    %vm236 = vcmp.eq.s32.totalorder %v66, %v228
    %v237 = vsel %vm229, 1.0, 0.0
    %v238 = vsel %vm230, 1.0, 0.0
    %v239 = vsel %vm231, 1.0, 0.0
    %v240 = vsel %vm232, 1.0, 0.0
    %v241 = vsel %vm233, 1.0, 0.0
    %v242 = vsel %vm234, 1.0, 0.0
    %v243 = vsel %vm235, 1.0, 0.0
    %v244 = vsel %vm236, 1.0, 0.0
    %v245 = vpack.c.bf16 %v238, %v237
    %v246 = vpack.c.bf16 %v240, %v239
    %v247 = vpack.c.bf16 %v242, %v241
    %v248 = vpack.c.bf16 %v244, %v243
    %249 = vmatpush.bf16.msra.mxu0 %v150
    %250 = vmatpush.bf16.msra.mxu0 %v149
    %251 = vmatpush.bf16.msra.mxu0 %v148
    %252 = vmatpush.bf16.msra.mxu0 %v147
    %253 = vmatpush.bf16.msra.mxu0 %v146
    %254 = vmatpush.bf16.msra.mxu0 %v145
    %255 = vmatpush.bf16.msra.mxu0 %v144
    %256 = vmatpush.bf16.msra.mxu0 %v143
    %257 = vmatmul.bf16.gmra.mxu0 %v245
    %v258 = vpop.f32.mrf.mxu0
    %v259 = vadd.f32 0.0, %v258
    %v260 = vpop.f32.mrf.mxu0
    %v261 = vadd.f32 0.0, %v260
    %262 = vmatmul.bf16.gmra.mxu0 %v246
    %v263 = vpop.f32.mrf.mxu0
    %v264 = vadd.f32 0.0, %v263
    %v265 = vpop.f32.mrf.mxu0
    %v266 = vadd.f32 0.0, %v265
    %267 = vmatmul.bf16.gmra.mxu0 %v247
    %v268 = vpop.f32.mrf.mxu0
    %v269 = vadd.f32 0.0, %v268
    %v270 = vpop.f32.mrf.mxu0
    %v271 = vadd.f32 0.0, %v270
    %272 = vmatmul.bf16.gmra.mxu0 %v248
    %v273 = vpop.f32.mrf.mxu0
    %v274 = vadd.f32 0.0, %v273
    %v275 = vpop.f32.mrf.mxu0
    %v276 = vadd.f32 0.0, %v275
    %277 = vdwg.mxu0
    %v278 = vpack.c.bf16 %v259, %v259
    %v279 = vpack.c.bf16 %v261, %v261
    %v280 = vpack.c.bf16 %v264, %v264
    %v281 = vpack.c.bf16 %v266, %v266
    %v282 = vpack.c.bf16 %v269, %v269
    %v283 = vpack.c.bf16 %v271, %v271
    %v284 = vpack.c.bf16 %v274, %v274
    %v285 = vpack.c.bf16 %v276, %v276
    %294 = vrot.lane.b32.xlu0 %v278, 32
    %v295 = vpop.permute.xlu0 %294
    %296 = vrot.lane.b32.xlu0 %v279, 32
    %v297 = vpop.permute.xlu0 %296
    %298 = vrot.lane.b32.xlu0 %v280, 32
    %v299 = vpop.permute.xlu0 %298
    %300 = vrot.lane.b32.xlu0 %v281, 32
    %v301 = vpop.permute.xlu0 %300
    %302 = vrot.lane.b32.xlu0 %v282, 32
    %v303 = vpop.permute.xlu0 %302
    %304 = vrot.lane.b32.xlu0 %v283, 32
    %v305 = vpop.permute.xlu0 %304
    %306 = vrot.lane.b32.xlu0 %v284, 32
    %v307 = vpop.permute.xlu0 %306
    %308 = vrot.lane.b32.xlu0 %v285, 32
    %v309 = vpop.permute.xlu0 %308
    %vm318 = vcmask 519424
    %319 = vst.msk [vmem:[#allocation2] sm:$0xf] %vm318, %v295
    %320 = vst.msk [vmem:[#allocation2 + $0x4] sm:$0xf] %vm318, %v297
    %321 = vst.msk [vmem:[#allocation2 + $0x8] sm:$0xf] %vm318, %v299
    %322 = vst.msk [vmem:[#allocation2 + $0xc] sm:$0xf] %vm318, %v301
    %323 = vst.msk [vmem:[#allocation2 + $0x10] sm:$0xf] %vm318, %v303
    %324 = vst.msk [vmem:[#allocation2 + $0x14] sm:$0xf] %vm318, %v305
    %325 = vst.msk [vmem:[#allocation2 + $0x18] sm:$0xf] %vm318, %v307
    %326 = vst.msk [vmem:[#allocation2 + $0x1c] sm:$0xf] %vm318, %v309
    %327 = vset.pattern.permute.xlu0 2
    %328 = vperm.xlu0 %327, %v57
    %v329 = vpop.permute.xlu0 %328
    %330 = vset.pattern.permute.xlu0 2
    %331 = vperm.xlu0 %330, %v58
    %v332 = vpop.permute.xlu0 %331
    %333 = vset.pattern.permute.xlu0 2
    %334 = vperm.xlu0 %333, %v59
    %v335 = vpop.permute.xlu0 %334
    %336 = vset.pattern.permute.xlu0 2
    %337 = vperm.xlu0 %336, %v60
    %v338 = vpop.permute.xlu0 %337
    %339 = vset.pattern.permute.xlu0 2
    %340 = vperm.xlu0 %339, %v61
    %v341 = vpop.permute.xlu0 %340
    %342 = vset.pattern.permute.xlu0 2
    %343 = vperm.xlu0 %342, %v62
    %v344 = vpop.permute.xlu0 %343
    %345 = vset.pattern.permute.xlu0 2
    %346 = vperm.xlu0 %345, %v63
    %v347 = vpop.permute.xlu0 %346
    %348 = vset.pattern.permute.xlu0 2
    %349 = vperm.xlu0 %348, %v64
    %v350 = vpop.permute.xlu0 %349
    %vm351 = vcmp.eq.s32.totalorder %v66, %v329
    %vm352 = vcmp.eq.s32.totalorder %v66, %v332
    %vm353 = vcmp.eq.s32.totalorder %v66, %v335
    %vm354 = vcmp.eq.s32.totalorder %v66, %v338
    %vm355 = vcmp.eq.s32.totalorder %v66, %v341
    %vm356 = vcmp.eq.s32.totalorder %v66, %v344
    %vm357 = vcmp.eq.s32.totalorder %v66, %v347
    %vm358 = vcmp.eq.s32.totalorder %v66, %v350
    %v359 = vsel %vm351, 1.0, 0.0
    %v360 = vsel %vm352, 1.0, 0.0
    %v361 = vsel %vm353, 1.0, 0.0
    %v362 = vsel %vm354, 1.0, 0.0
    %v363 = vsel %vm355, 1.0, 0.0
    %v364 = vsel %vm356, 1.0, 0.0
    %v365 = vsel %vm357, 1.0, 0.0
    %v366 = vsel %vm358, 1.0, 0.0
    %v367 = vpack.c.bf16 %v360, %v359
    %v368 = vpack.c.bf16 %v362, %v361
    %v369 = vpack.c.bf16 %v364, %v363
    %v370 = vpack.c.bf16 %v366, %v365
    %371 = vmatpush.bf16.msra.mxu0 %v150
    %372 = vmatpush.bf16.msra.mxu0 %v149
    %373 = vmatpush.bf16.msra.mxu0 %v148
    %374 = vmatpush.bf16.msra.mxu0 %v147
    %375 = vmatpush.bf16.msra.mxu0 %v146
    %376 = vmatpush.bf16.msra.mxu0 %v145
    %377 = vmatpush.bf16.msra.mxu0 %v144
    %378 = vmatpush.bf16.msra.mxu0 %v143
    %379 = vmatmul.bf16.gmra.mxu0 %v367
    %v380 = vpop.f32.mrf.mxu0
    %v381 = vadd.f32 0.0, %v380
    %v382 = vpop.f32.mrf.mxu0
    %v383 = vadd.f32 0.0, %v382
    %384 = vmatmul.bf16.gmra.mxu0 %v368
    %v385 = vpop.f32.mrf.mxu0
    %v386 = vadd.f32 0.0, %v385
    %v387 = vpop.f32.mrf.mxu0
    %v388 = vadd.f32 0.0, %v387
    %389 = vmatmul.bf16.gmra.mxu0 %v369
    %v390 = vpop.f32.mrf.mxu0
    %v391 = vadd.f32 0.0, %v390
    %v392 = vpop.f32.mrf.mxu0
    %v393 = vadd.f32 0.0, %v392
    %394 = vmatmul.bf16.gmra.mxu0 %v370
    %v395 = vpop.f32.mrf.mxu0
    %v396 = vadd.f32 0.0, %v395
    %v397 = vpop.f32.mrf.mxu0
    %v398 = vadd.f32 0.0, %v397
    %399 = vdwg.mxu0
    %v400 = vpack.c.bf16 %v381, %v381
    %v401 = vpack.c.bf16 %v383, %v383
    %v402 = vpack.c.bf16 %v386, %v386
    %v403 = vpack.c.bf16 %v388, %v388
    %v404 = vpack.c.bf16 %v391, %v391
    %v405 = vpack.c.bf16 %v393, %v393
    %v406 = vpack.c.bf16 %v396, %v396
    %v407 = vpack.c.bf16 %v398, %v398
    %416 = vrot.lane.b32.xlu0 %v400, 64
    %v417 = vpop.permute.xlu0 %416
    %418 = vrot.lane.b32.xlu0 %v401, 64
    %v419 = vpop.permute.xlu0 %418
    %420 = vrot.lane.b32.xlu0 %v402, 64
    %v421 = vpop.permute.xlu0 %420
    %422 = vrot.lane.b32.xlu0 %v403, 64
    %v423 = vpop.permute.xlu0 %422
    %424 = vrot.lane.b32.xlu0 %v404, 64
    %v425 = vpop.permute.xlu0 %424
    %426 = vrot.lane.b32.xlu0 %v405, 64
    %v427 = vpop.permute.xlu0 %426
    %428 = vrot.lane.b32.xlu0 %v406, 64
    %v429 = vpop.permute.xlu0 %428
    %430 = vrot.lane.b32.xlu0 %v407, 64
    %v431 = vpop.permute.xlu0 %430
    %vm440 = vcmask 781824
    %441 = vst.msk [vmem:[#allocation2] sm:$0xf] %vm440, %v417
    %442 = vst.msk [vmem:[#allocation2 + $0x4] sm:$0xf] %vm440, %v419
    %443 = vst.msk [vmem:[#allocation2 + $0x8] sm:$0xf] %vm440, %v421
    %444 = vst.msk [vmem:[#allocation2 + $0xc] sm:$0xf] %vm440, %v423
    %445 = vst.msk [vmem:[#allocation2 + $0x10] sm:$0xf] %vm440, %v425
    %446 = vst.msk [vmem:[#allocation2 + $0x14] sm:$0xf] %vm440, %v427
    %447 = vst.msk [vmem:[#allocation2 + $0x18] sm:$0xf] %vm440, %v429
    %448 = vst.msk [vmem:[#allocation2 + $0x1c] sm:$0xf] %vm440, %v431
    %449 = vset.pattern.permute.xlu0 3
    %450 = vperm.xlu0 %449, %v57
    %v451 = vpop.permute.xlu0 %450
    %452 = vset.pattern.permute.xlu0 3
    %453 = vperm.xlu0 %452, %v58
    %v454 = vpop.permute.xlu0 %453
    %455 = vset.pattern.permute.xlu0 3
    %456 = vperm.xlu0 %455, %v59
    %v457 = vpop.permute.xlu0 %456
    %458 = vset.pattern.permute.xlu0 3
    %459 = vperm.xlu0 %458, %v60
    %v460 = vpop.permute.xlu0 %459
    %461 = vset.pattern.permute.xlu0 3
    %462 = vperm.xlu0 %461, %v61
    %v463 = vpop.permute.xlu0 %462
    %464 = vset.pattern.permute.xlu0 3
    %465 = vperm.xlu0 %464, %v62
    %v466 = vpop.permute.xlu0 %465
    %467 = vset.pattern.permute.xlu0 3
    %468 = vperm.xlu0 %467, %v63
    %v469 = vpop.permute.xlu0 %468
    %470 = vset.pattern.permute.xlu0 3
    %471 = vperm.xlu0 %470, %v64
    %v472 = vpop.permute.xlu0 %471
    %vm473 = vcmp.eq.s32.totalorder %v66, %v451
    %vm474 = vcmp.eq.s32.totalorder %v66, %v454
    %vm475 = vcmp.eq.s32.totalorder %v66, %v457
    %vm476 = vcmp.eq.s32.totalorder %v66, %v460
    %vm477 = vcmp.eq.s32.totalorder %v66, %v463
    %vm478 = vcmp.eq.s32.totalorder %v66, %v466
    %vm479 = vcmp.eq.s32.totalorder %v66, %v469
    %vm480 = vcmp.eq.s32.totalorder %v66, %v472
    %v481 = vsel %vm473, 1.0, 0.0
    %v482 = vsel %vm474, 1.0, 0.0
    %v483 = vsel %vm475, 1.0, 0.0
    %v484 = vsel %vm476, 1.0, 0.0
    %v485 = vsel %vm477, 1.0, 0.0
    %v486 = vsel %vm478, 1.0, 0.0
    %v487 = vsel %vm479, 1.0, 0.0
    %v488 = vsel %vm480, 1.0, 0.0
    %v489 = vpack.c.bf16 %v482, %v481
    %v490 = vpack.c.bf16 %v484, %v483
    %v491 = vpack.c.bf16 %v486, %v485
    %v492 = vpack.c.bf16 %v488, %v487
    %493 = vmatpush.bf16.msra.mxu0 %v150
    %494 = vmatpush.bf16.msra.mxu0 %v149
    %495 = vmatpush.bf16.msra.mxu0 %v148
    %496 = vmatpush.bf16.msra.mxu0 %v147
    %497 = vmatpush.bf16.msra.mxu0 %v146
    %498 = vmatpush.bf16.msra.mxu0 %v145
    %499 = vmatpush.bf16.msra.mxu0 %v144
    %500 = vmatpush.bf16.msra.mxu0 %v143
    %501 = vmatmul.bf16.gmra.mxu0 %v489
    %v502 = vpop.f32.mrf.mxu0
    %v503 = vadd.f32 0.0, %v502
    %v504 = vpop.f32.mrf.mxu0
    %v505 = vadd.f32 0.0, %v504
    %506 = vmatmul.bf16.gmra.mxu0 %v490
    %v507 = vpop.f32.mrf.mxu0
    %v508 = vadd.f32 0.0, %v507
    %v509 = vpop.f32.mrf.mxu0
    %v510 = vadd.f32 0.0, %v509
    %511 = vmatmul.bf16.gmra.mxu0 %v491
    %v512 = vpop.f32.mrf.mxu0
    %v513 = vadd.f32 0.0, %v512
    %v514 = vpop.f32.mrf.mxu0
    %v515 = vadd.f32 0.0, %v514
    %516 = vmatmul.bf16.gmra.mxu0 %v492
    %v517 = vpop.f32.mrf.mxu0
    %v518 = vadd.f32 0.0, %v517
    %v519 = vpop.f32.mrf.mxu0
    %v520 = vadd.f32 0.0, %v519
    %521 = vdwg.mxu0
    %v522 = vpack.c.bf16 %v503, %v503
    %v523 = vpack.c.bf16 %v505, %v505
    %v524 = vpack.c.bf16 %v508, %v508
    %v525 = vpack.c.bf16 %v510, %v510
    %v526 = vpack.c.bf16 %v513, %v513
    %v527 = vpack.c.bf16 %v515, %v515
    %v528 = vpack.c.bf16 %v518, %v518
    %v529 = vpack.c.bf16 %v520, %v520
    %538 = vrot.lane.b32.xlu0 %v522, 96
    %v539 = vpop.permute.xlu0 %538
    %540 = vrot.lane.b32.xlu0 %v523, 96
    %v541 = vpop.permute.xlu0 %540
    %542 = vrot.lane.b32.xlu0 %v524, 96
    %v543 = vpop.permute.xlu0 %542
    %544 = vrot.lane.b32.xlu0 %v525, 96
    %v545 = vpop.permute.xlu0 %544
    %546 = vrot.lane.b32.xlu0 %v526, 96
    %v547 = vpop.permute.xlu0 %546
    %548 = vrot.lane.b32.xlu0 %v527, 96
    %v549 = vpop.permute.xlu0 %548
    %550 = vrot.lane.b32.xlu0 %v528, 96
    %v551 = vpop.permute.xlu0 %550
    %552 = vrot.lane.b32.xlu0 %v529, 96
    %v553 = vpop.permute.xlu0 %552
    %vm562 = vcmask 1044224
    %563 = vst.msk [vmem:[#allocation2] sm:$0xf] %vm562, %v539
    %564 = vst.msk [vmem:[#allocation2 + $0x4] sm:$0xf] %vm562, %v541
    %565 = vst.msk [vmem:[#allocation2 + $0x8] sm:$0xf] %vm562, %v543
    %566 = vst.msk [vmem:[#allocation2 + $0xc] sm:$0xf] %vm562, %v545
    %567 = vst.msk [vmem:[#allocation2 + $0x10] sm:$0xf] %vm562, %v547
    %568 = vst.msk [vmem:[#allocation2 + $0x14] sm:$0xf] %vm562, %v549
    %569 = vst.msk [vmem:[#allocation2 + $0x18] sm:$0xf] %vm562, %v551
    %570 = vst.msk [vmem:[#allocation2 + $0x1c] sm:$0xf] %vm562, %v553
    %v571 = vld [vmem:[#allocation2] sm:$0xf]
    %v572 = vld [vmem:[#allocation2 + $0x4] sm:$0xf]
    %v573 = vld [vmem:[#allocation2 + $0x8] sm:$0xf]
    %v574 = vld [vmem:[#allocation2 + $0xc] sm:$0xf]
    %v575 = vld [vmem:[#allocation2 + $0x10] sm:$0xf]
    %v576 = vld [vmem:[#allocation2 + $0x14] sm:$0xf]
    %v577 = vld [vmem:[#allocation2 + $0x18] sm:$0xf]
    %v578 = vld [vmem:[#allocation2 + $0x1c] sm:$0xf]
    %v579 = vld [vmem:[%s2] sm:$0xf]
    %v580 = vld [vmem:[%s2 + $0x4] sm:$0xf]
    %v581 = vld [vmem:[%s2 + $0x8] sm:$0xf]
    %v582 = vld [vmem:[%s2 + $0xc] sm:$0xf]
    %v583 = vld [vmem:[%s2 + $0x10] sm:$0xf]
    %v584 = vld [vmem:[%s2 + $0x14] sm:$0xf]
    %v585 = vld [vmem:[%s2 + $0x18] sm:$0xf]
    %v586 = vld [vmem:[%s2 + $0x1c] sm:$0xf]
    %v587 = vld [vmem:[%s2 + $0x20] sm:$0xf]
    %v588 = vld [vmem:[%s2 + $0x24] sm:$0xf]
    %v589 = vld [vmem:[%s2 + $0x28] sm:$0xf]
    %v590 = vld [vmem:[%s2 + $0x2c] sm:$0xf]
    %v591 = vld [vmem:[%s2 + $0x30] sm:$0xf]
    %v592 = vld [vmem:[%s2 + $0x34] sm:$0xf]
    %v593 = vld [vmem:[%s2 + $0x38] sm:$0xf]
    %v594 = vld [vmem:[%s2 + $0x3c] sm:$0xf]
    %v595 = vld [vmem:[%s3] sm:$0x1]
    %v597 = vperm.slane %v595, 0
    %v607 = vunpack.c.l.b16 %v571
    %v608 = vunpack.c.l.b16 %v572
    %v609 = vunpack.c.l.b16 %v573
    %v610 = vunpack.c.l.b16 %v574
    %v611 = vunpack.c.l.b16 %v575
    %v612 = vunpack.c.l.b16 %v576
    %v613 = vunpack.c.l.b16 %v577
    %v614 = vunpack.c.l.b16 %v578
    %v615 = vpack.c.b16 %v608, %v607
    %v616 = vpack.c.b16 %v610, %v609
    %v617 = vpack.c.b16 %v612, %v611
    %v618 = vpack.c.b16 %v614, %v613
    %v639 = vunpack.c.l.b16 %v579
    %v640 = vunpack.c.l.b16 %v580
    %v641 = vunpack.c.l.b16 %v581
    %v642 = vunpack.c.l.b16 %v582
    %v643 = vunpack.c.l.b16 %v583
    %v644 = vunpack.c.l.b16 %v584
    %v645 = vunpack.c.l.b16 %v585
    %v646 = vunpack.c.l.b16 %v586
    %v647 = vunpack.c.l.b16 %v587
    %v648 = vunpack.c.l.b16 %v588
    %v649 = vunpack.c.l.b16 %v589
    %v650 = vunpack.c.l.b16 %v590
    %v651 = vunpack.c.l.b16 %v591
    %v652 = vunpack.c.l.b16 %v592
    %v653 = vunpack.c.l.b16 %v593
    %v654 = vunpack.c.l.b16 %v594
    %v655 = vpack.c.b16 %v640, %v639
    %v656 = vpack.c.b16 %v642, %v641
    %v657 = vpack.c.b16 %v644, %v643
    %v658 = vpack.c.b16 %v646, %v645
    %v659 = vpack.c.b16 %v648, %v647
    %v660 = vpack.c.b16 %v650, %v649
    %v661 = vpack.c.b16 %v652, %v651
    %v662 = vpack.c.b16 %v654, %v653
    %671 = vmatpush.bf16.msra.mxu0 %v662
    %672 = vmatpush.bf16.msra.mxu0 %v661
    %673 = vmatpush.bf16.msra.mxu0 %v660
    %674 = vmatpush.bf16.msra.mxu0 %v659
    %675 = vmatpush.bf16.msra.mxu0 %v658
    %676 = vmatpush.bf16.msra.mxu0 %v657
    %677 = vmatpush.bf16.msra.mxu0 %v656
    %678 = vmatpush.bf16.msra.mxu0 %v655
    %679 = vmatmul.bf16.gmra.mxu0 %v615
    %v680 = vpop.f32.mrf.mxu0
    %v681 = vadd.f32 %v597, %v680
    %v682 = vpop.f32.mrf.mxu0
    %v683 = vadd.f32 %v597, %v682
    %684 = vmatmul.bf16.gmra.mxu0 %v616
    %v685 = vpop.f32.mrf.mxu0
    %v686 = vadd.f32 %v597, %v685
    %v687 = vpop.f32.mrf.mxu0
    %v688 = vadd.f32 %v597, %v687
    %689 = vmatmul.bf16.gmra.mxu0 %v617
    %v690 = vpop.f32.mrf.mxu0
    %v691 = vadd.f32 %v597, %v690
    %v692 = vpop.f32.mrf.mxu0
    %v693 = vadd.f32 %v597, %v692
    %694 = vmatmul.bf16.gmra.mxu0 %v618
    %v695 = vpop.f32.mrf.mxu0
    %v696 = vadd.f32 %v597, %v695
    %v697 = vpop.f32.mrf.mxu0
    %v698 = vadd.f32 %v597, %v697
    %699 = vdwg.mxu0
    %v700 = vmax.f32 %v681, 0.0
    %v701 = vmax.f32 %v683, 0.0
    %v702 = vmax.f32 %v686, 0.0
    %v703 = vmax.f32 %v688, 0.0
    %v704 = vmax.f32 %v691, 0.0
    %v705 = vmax.f32 %v693, 0.0
    %v706 = vmax.f32 %v696, 0.0
    %v707 = vmax.f32 %v698, 0.0
    %v708 = vld [vmem:[#allocation3] sm:$0xff]
    %vm709 = vcmp.gt.f32.partialorder %v708, 0.0
    %v710 = vsel %vm709, 1, 0
    %vm711 = vcmp.eq.s32.totalorder %v710, 1
    %v712 = vsel %vm711, %v700, 0.0
    %v713 = vsel %vm711, %v701, 0.0
    %v714 = vsel %vm711, %v702, 0.0
    %v715 = vsel %vm711, %v703, 0.0
    %v716 = vsel %vm711, %v704, 0.0
    %v717 = vsel %vm711, %v705, 0.0
    %v718 = vsel %vm711, %v706, 0.0
    %v719 = vsel %vm711, %v707, 0.0
    %v720 = vrot.slane %v712, 4
    %v721 = vmax.f32 %v712, %v720
    %v722 = vrot.slane %v721, 2
    %v723 = vmax.f32 %v721, %v722
    %v724 = vrot.slane %v723, 1
    %v725 = vmax.f32 %v723, %v724
    %v726 = vrot.slane %v713, 4
    %v727 = vmax.f32 %v713, %v726
    %v728 = vrot.slane %v727, 2
    %v729 = vmax.f32 %v727, %v728
    %v730 = vrot.slane %v729, 1
    %v731 = vmax.f32 %v729, %v730
    %v732 = vrot.slane %v714, 4
    %v733 = vmax.f32 %v714, %v732
    %v734 = vrot.slane %v733, 2
    %v735 = vmax.f32 %v733, %v734
    %v736 = vrot.slane %v735, 1
    %v737 = vmax.f32 %v735, %v736
    %v738 = vrot.slane %v715, 4
    %v739 = vmax.f32 %v715, %v738
    %v740 = vrot.slane %v739, 2
    %v741 = vmax.f32 %v739, %v740
    %v742 = vrot.slane %v741, 1
    %v743 = vmax.f32 %v741, %v742
    %v744 = vrot.slane %v716, 4
    %v745 = vmax.f32 %v716, %v744
    %v746 = vrot.slane %v745, 2
    %v747 = vmax.f32 %v745, %v746
    %v748 = vrot.slane %v747, 1
    %v749 = vmax.f32 %v747, %v748
    %v750 = vrot.slane %v717, 4
    %v751 = vmax.f32 %v717, %v750
    %v752 = vrot.slane %v751, 2
    %v753 = vmax.f32 %v751, %v752
    %v754 = vrot.slane %v753, 1
    %v755 = vmax.f32 %v753, %v754
    %v756 = vrot.slane %v718, 4
    %v757 = vmax.f32 %v718, %v756
    %v758 = vrot.slane %v757, 2
    %v759 = vmax.f32 %v757, %v758
    %v760 = vrot.slane %v759, 1
    %v761 = vmax.f32 %v759, %v760
    %v762 = vrot.slane %v719, 4
    %v763 = vmax.f32 %v719, %v762
    %v764 = vrot.slane %v763, 2
    %v765 = vmax.f32 %v763, %v764
    %v766 = vrot.slane %v765, 1
    %v767 = vmax.f32 %v765, %v766
    %v768 = vpack.c.bf16 %v725, %v725
    %v769 = vpack.c.bf16 %v731, %v731
    %v770 = vpack.c.bf16 %v737, %v737
    %v771 = vpack.c.bf16 %v743, %v743
    %v772 = vpack.c.bf16 %v749, %v749
    %v773 = vpack.c.bf16 %v755, %v755
    %v774 = vpack.c.bf16 %v761, %v761
    %v775 = vpack.c.bf16 %v767, %v767
    %v776 = vld [vmem:[%s5] sm:$0xf]
    %v777 = vld [vmem:[%s5 + $0x4] sm:$0xf]
    %v778 = vld [vmem:[%s5 + $0x8] sm:$0xf]
    %v779 = vld [vmem:[%s5 + $0xc] sm:$0xf]
    %v780 = vld [vmem:[%s5 + $0x10] sm:$0xf]
    %v781 = vld [vmem:[%s5 + $0x14] sm:$0xf]
    %v782 = vld [vmem:[%s5 + $0x18] sm:$0xf]
    %v783 = vld [vmem:[%s5 + $0x1c] sm:$0xf]
    %v784 = vld [vmem:[%s5 + $0x20] sm:$0xf]
    %v785 = vld [vmem:[%s5 + $0x24] sm:$0xf]
    %v786 = vld [vmem:[%s5 + $0x28] sm:$0xf]
    %v787 = vld [vmem:[%s5 + $0x2c] sm:$0xf]
    %v788 = vld [vmem:[%s5 + $0x30] sm:$0xf]
    %v789 = vld [vmem:[%s5 + $0x34] sm:$0xf]
    %v790 = vld [vmem:[%s5 + $0x38] sm:$0xf]
    %v791 = vld [vmem:[%s5 + $0x3c] sm:$0xf]
    %v792 = vld [vmem:[%s6] sm:$0x1]
    %v794 = vperm.slane %v792, 0
    %v804 = vunpack.c.l.b16 %v768
    %v805 = vunpack.c.l.b16 %v769
    %v806 = vunpack.c.l.b16 %v770
    %v807 = vunpack.c.l.b16 %v771
    %v808 = vunpack.c.l.b16 %v772
    %v809 = vunpack.c.l.b16 %v773
    %v810 = vunpack.c.l.b16 %v774
    %v811 = vunpack.c.l.b16 %v775
    %vm812 = vcmask 1041409
    %v813 = vsel %vm812, %v805, %v804
    %vm814 = vcmask 1042434
    %v815 = vsel %vm814, %v806, %v813
    %vm816 = vcmask 1043459
    %v817 = vsel %vm816, %v807, %v815
    %vm818 = vcmask 1044484
    %v819 = vsel %vm818, %v808, %v817
    %vm820 = vcmask 1045509
    %v821 = vsel %vm820, %v809, %v819
    %vm822 = vcmask 1046534
    %v823 = vsel %vm822, %v810, %v821
    %vm824 = vcmask 1047559
    %v825 = vsel %vm824, %v811, %v823
    %v826 = vpack.c.b16 %v825, %v825
    %v844 = vunpack.c.l.b16 %v776
    %v845 = vunpack.c.l.b16 %v777
    %v846 = vunpack.c.l.b16 %v778
    %v847 = vunpack.c.l.b16 %v779
    %v848 = vunpack.c.l.b16 %v780
    %v849 = vunpack.c.l.b16 %v781
    %v850 = vunpack.c.l.b16 %v782
    %v851 = vunpack.c.l.b16 %v783
    %v852 = vunpack.c.l.b16 %v784
    %v853 = vunpack.c.l.b16 %v785
    %v854 = vunpack.c.l.b16 %v786
    %v855 = vunpack.c.l.b16 %v787
    %v856 = vunpack.c.l.b16 %v788
    %v857 = vunpack.c.l.b16 %v789
    %v858 = vunpack.c.l.b16 %v790
    %v859 = vunpack.c.l.b16 %v791
    %v860 = vpack.c.b16 %v845, %v844
    %v861 = vpack.c.b16 %v847, %v846
    %v862 = vpack.c.b16 %v849, %v848
    %v863 = vpack.c.b16 %v851, %v850
    %v864 = vpack.c.b16 %v853, %v852
    %v865 = vpack.c.b16 %v855, %v854
    %v866 = vpack.c.b16 %v857, %v856
    %v867 = vpack.c.b16 %v859, %v858
    %876 = vmatpush.bf16.msra.mxu0 %v867
    %877 = vmatpush.bf16.msra.mxu0 %v866
    %878 = vmatpush.bf16.msra.mxu0 %v865
    %879 = vmatpush.bf16.msra.mxu0 %v864
    %880 = vmatpush.bf16.msra.mxu0 %v863
    %881 = vmatpush.bf16.msra.mxu0 %v862
    %882 = vmatpush.bf16.msra.mxu0 %v861
    %883 = vmatpush.bf16.msra.mxu0 %v860
    %884 = vmatmul.bf16.gmra.mxu0 %v826
    %v885 = vpop.f32.mrf.mxu0
    %v886 = vadd.f32 %v794, %v885
    %v887 = vpop.f32.mrf.mxu0
    %888 = vdwg.mxu0
    %889 = vst [vmem:[#allocation6] sm:$0xff] %v886
    // Predicated region
    $region34: #{tpu_custom_call.1} parent=1 // pred_check
      _
    $region35: #{tpu_custom_call.1} parent=1 // pred_check_branch
      %891 = sbr.rel (0) target = $region37
    $region36: #{tpu_custom_call.1} parent=1 // pred_region
      %893 = vsyncadd [#allocation5], 0
      %s895 = sshll.u32 [#allocation6], 4
      %s896 = int_to_ptr.vmem [resolvable:$true] %s895
      %s897 = sshll.u32 %s7, 4
      %s898 = int_to_ptr.hbm [resolvable:$true] %s897
      %900 = dma.vmem_to_hbm [thread:$0]  %s896, 128, %s898, [#allocation5]
    $region37: #{tpu_custom_call.1} parent=1 // pred_fallthru
      _
    // Predicated region
    $region38: #{tpu_custom_call.1} parent=1 // pred_check
      _
    $region39: #{tpu_custom_call.1} parent=1 // pred_check_branch
      %902 = sbr.rel (0) target = $region41
    $region40: #{tpu_custom_call.1} parent=1 // pred_region
      %904 = dma.done [#allocation5], 128
    $region41: #{tpu_custom_call.1} parent=1 // pred_fallthru
      _
    %905 = vsyncpa [#allocation4], 1
    %906 = vsyncpa [#allocation5], 1

</llo_original>
